<compile_context>
chip_gen: v7x
topology: tpu7x:2x2x1
jax: 0.10.0
libtpu: 0.0.40
codegen_flags: <defaults>
</compile_context>

<pallas_src>
import jax
import jax.numpy as jnp
from jax import lax
from jax.experimental import pallas as pl
from jax.experimental.pallas import tpu as pltpu

EPS = 1e-5


def _conv_bn_kernel(w_ref, x_ref, o_ref):
    # w_ref : (Cout, Cin*KH*KW) f32 in VMEM
    # x_ref : (N, Cin, H, W)    f32 in VMEM
    # o_ref : (Cout, N*OH*OW)   f32 in VMEM  (lane-dense, single store)
    N, Cin, H, W = x_ref.shape
    Cout, K = w_ref.shape
    R = o_ref.shape[1]                       # N * OH * OW
    # Kernel spatial extent from K = Cin*KH*KW with square kernel (KH == KW).
    KH = KW = 2
    OH, OW = H - KH + 1, W - KW + 1

    # Load x ONCE; derive the 8 shifted windows from the loaded value (register
    # slices), not from the Ref (Ref slices are not views -> extra masked vlds).
    xv = x_ref[...]                          # (N, Cin, H, W) in vregs
    rows = []
    for c in range(Cin):
        for kh in range(KH):
            for kw in range(KW):
                win = lax.slice(xv, (0, c, kh, kw),
                                (N, c + 1, kh + OH, kw + OW))   # (N,1,OH,OW)
                rows.append(win.reshape(1, R))
    patches = jnp.concatenate(rows, axis=0)  # (K, R) = (8, 9)

    # Convolution: one tiny MXU matmul, f32 accumulation.
    y = jnp.dot(w_ref[...], patches, preferred_element_type=jnp.float32)  # (5, 9)

    # BatchNorm2d (training mode, affine=False), vectorized over channels.
    # Biased variance over (N, OH, OW) == axis -1 of the (Cout, R) tile.
    inv_cnt = 1.0 / float(R)
    s = jnp.sum(y, axis=-1, keepdims=True)           # (Cout, 1)
    ssq = jnp.sum(y * y, axis=-1, keepdims=True)     # (Cout, 1)
    mean = s * inv_cnt
    # var = E[x^2] - mean^2; clamp at 0 to guard the (tiny) f32 cancellation.
    var = jnp.maximum(ssq * inv_cnt - mean * mean, 0.0)
    o_ref[...] = ((y - mean) * lax.rsqrt(var + EPS)).astype(o_ref.dtype)


def conv_bn_pallas(x, w):
    """x: (N, Cin, H, W) f32 NCHW; w: (Cout, Cin, KH, KW) f32 OIHW -> NCHW out."""
    N, Cin, H, W = x.shape
    Cout, Cin2, KH, KW = w.shape
    assert Cin == Cin2
    OH, OW = H - KH + 1, W - KW + 1
    R = N * OH * OW

    # (Cout, Cin*KH*KW) — row-major reshape preserves the (cin, kh, kw) order
    # used to build the patches rows inside the kernel.
    w2d = w.reshape(Cout, Cin * KH * KW).astype(jnp.float32)

    out = pl.pallas_call(
        _conv_bn_kernel,
        out_shape=jax.ShapeDtypeStruct((Cout, R), jnp.float32),
        in_specs=[
            pl.BlockSpec(memory_space=pltpu.MemorySpace.VMEM),  # weights (5, 8)
            pl.BlockSpec(memory_space=pltpu.MemorySpace.VMEM),  # x
        ],
        out_specs=pl.BlockSpec(memory_space=pltpu.MemorySpace.VMEM),
    )(w2d, x.astype(jnp.float32))

    # (Cout, N, OH, OW) -> (N, Cout, OH, OW); pure metadata for N == 1.
    return out.reshape(Cout, N, OH, OW).transpose(1, 0, 2, 3)


def reference(x, w):
    y = lax.conv_general_dilated(
        x, w, window_strides=(1, 1), padding="VALID",
        dimension_numbers=("NCHW", "OIHW", "NCHW"),
    )
    mean = jnp.mean(y, axis=(0, 2, 3), keepdims=True)
    var = jnp.mean((y - mean) ** 2, axis=(0, 2, 3), keepdims=True)
    return (y - mean) * lax.rsqrt(var + EPS)


if __name__ == "__main__":
    key = jax.random.PRNGKey(0)
    kx, kw = jax.random.split(key)
    # Shapes implied by the module: x1 = (1, 2, 4, 4), conv weight (5, 2, 2, 2).
    x = jax.random.normal(kx, (1, 2, 4, 4), dtype=jnp.float32)
    w = jax.random.normal(kw, (5, 2, 2, 2), dtype=jnp.float32) * 0.1

    out = jax.jit(conv_bn_pallas)(x, w)
    out = jax.block_until_ready(out)

    ref = reference(x, w)
    assert out.shape == (1, 5, 3, 3), out.shape
    assert jnp.allclose(out, ref, atol=1e-4, rtol=1e-4), \
        float(jnp.max(jnp.abs(out - ref)))
    print("KERNEL_OK")
</pallas_src>

<mosaic_0001>
module attributes {stable_mosaic.version = 11 : i64} {
  func.func @_conv_bn_kernel(%arg0: memref<5x8xf32, #tpu.memory_space<vmem>>, %arg1: memref<1x2x4x4xf32, #tpu.memory_space<vmem>>, %arg2: memref<5x9xf32, #tpu.memory_space<vmem>>) attributes {dimension_semantics = [], scalar_prefetch = 0 : i64, scratch_operands = 0 : i64, tpu.core_type = #tpu.core_type<tc>} {
    %c0 = arith.constant 0 : index
    %c0_0 = arith.constant 0 : index
    %c0_1 = arith.constant 0 : index
    %c0_2 = arith.constant 0 : index
    %0 = vector.load %arg1[%c0, %c0_0, %c0_1, %c0_2] : memref<1x2x4x4xf32, #tpu.memory_space<vmem>>, vector<1x2x4x4xf32>
    %1 = vector.extract_strided_slice %0 {offsets = [0, 0, 0, 0], sizes = [1, 1, 3, 3], strides = [1, 1, 1, 1]} : vector<1x2x4x4xf32> to vector<1x1x3x3xf32>
    %2 = vector.shape_cast %1 : vector<1x1x3x3xf32> to vector<1x9xf32>
    %3 = vector.extract_strided_slice %0 {offsets = [0, 0, 0, 1], sizes = [1, 1, 3, 3], strides = [1, 1, 1, 1]} : vector<1x2x4x4xf32> to vector<1x1x3x3xf32>
    %4 = vector.shape_cast %3 : vector<1x1x3x3xf32> to vector<1x9xf32>
    %5 = vector.extract_strided_slice %0 {offsets = [0, 0, 1, 0], sizes = [1, 1, 3, 3], strides = [1, 1, 1, 1]} : vector<1x2x4x4xf32> to vector<1x1x3x3xf32>
    %6 = vector.shape_cast %5 : vector<1x1x3x3xf32> to vector<1x9xf32>
    %7 = vector.extract_strided_slice %0 {offsets = [0, 0, 1, 1], sizes = [1, 1, 3, 3], strides = [1, 1, 1, 1]} : vector<1x2x4x4xf32> to vector<1x1x3x3xf32>
    %8 = vector.shape_cast %7 : vector<1x1x3x3xf32> to vector<1x9xf32>
    %9 = vector.extract_strided_slice %0 {offsets = [0, 1, 0, 0], sizes = [1, 1, 3, 3], strides = [1, 1, 1, 1]} : vector<1x2x4x4xf32> to vector<1x1x3x3xf32>
    %10 = vector.shape_cast %9 : vector<1x1x3x3xf32> to vector<1x9xf32>
    %11 = vector.extract_strided_slice %0 {offsets = [0, 1, 0, 1], sizes = [1, 1, 3, 3], strides = [1, 1, 1, 1]} : vector<1x2x4x4xf32> to vector<1x1x3x3xf32>
    %12 = vector.shape_cast %11 : vector<1x1x3x3xf32> to vector<1x9xf32>
    %13 = vector.extract_strided_slice %0 {offsets = [0, 1, 1, 0], sizes = [1, 1, 3, 3], strides = [1, 1, 1, 1]} : vector<1x2x4x4xf32> to vector<1x1x3x3xf32>
    %14 = vector.shape_cast %13 : vector<1x1x3x3xf32> to vector<1x9xf32>
    %15 = vector.extract_strided_slice %0 {offsets = [0, 1, 1, 1], sizes = [1, 1, 3, 3], strides = [1, 1, 1, 1]} : vector<1x2x4x4xf32> to vector<1x1x3x3xf32>
    %16 = vector.shape_cast %15 : vector<1x1x3x3xf32> to vector<1x9xf32>
    %17 = tpu.concatenate %2, %4, %6, %8, %10, %12, %14, %16 in 0 : vector<1x9xf32>, vector<1x9xf32>, vector<1x9xf32>, vector<1x9xf32>, vector<1x9xf32>, vector<1x9xf32>, vector<1x9xf32>, vector<1x9xf32> -> vector<8x9xf32>
    %c0_3 = arith.constant 0 : index
    %c0_4 = arith.constant 0 : index
    %18 = vector.load %arg0[%c0_3, %c0_4] : memref<5x8xf32, #tpu.memory_space<vmem>>, vector<5x8xf32>
    %cst = arith.constant dense<0.000000e+00> : vector<5x9xf32>
    %19 = tpu.matmul %18, %17, %cst {dimension_numbers = #tpu.dot_dimension_numbers<[1], [0], [0], [1], [0, 0, 1, 1], [], []>} : vector<5x8xf32>, vector<8x9xf32>, vector<5x9xf32> -> vector<5x9xf32>
    %cst_5 = arith.constant dense<0.000000e+00> : vector<5xf32>
    %20 = vector.multi_reduction <add>, %19, %cst_5 [1] : vector<5x9xf32> to vector<5xf32>
    %21 = vector.shape_cast %20 : vector<5xf32> to vector<5x1xf32>
    %22 = arith.mulf %19, %19 : vector<5x9xf32>
    %cst_6 = arith.constant dense<0.000000e+00> : vector<5xf32>
    %23 = vector.multi_reduction <add>, %22, %cst_6 [1] : vector<5x9xf32> to vector<5xf32>
    %24 = vector.shape_cast %23 : vector<5xf32> to vector<5x1xf32>
    %cst_7 = arith.constant 0.111111112 : f32
    %25 = vector.broadcast %cst_7 : f32 to vector<5x1xf32>
    %26 = arith.mulf %21, %25 : vector<5x1xf32>
    %cst_8 = arith.constant 0.111111112 : f32
    %27 = vector.broadcast %cst_8 : f32 to vector<5x1xf32>
    %28 = arith.mulf %24, %27 : vector<5x1xf32>
    %29 = arith.mulf %26, %26 : vector<5x1xf32>
    %30 = arith.subf %28, %29 : vector<5x1xf32>
    %cst_9 = arith.constant 0.000000e+00 : f32
    %31 = vector.broadcast %cst_9 : f32 to vector<5x1xf32>
    %32 = arith.maximumf %30, %31 : vector<5x1xf32>
    %33 = vector.broadcast %26 : vector<5x1xf32> to vector<5x9xf32>
    %34 = arith.subf %19, %33 : vector<5x9xf32>
    %cst_10 = arith.constant 9.99999974E-6 : f32
    %35 = vector.broadcast %cst_10 : f32 to vector<5x1xf32>
    %36 = arith.addf %32, %35 : vector<5x1xf32>
    %37 = math.rsqrt %36 : vector<5x1xf32>
    %38 = vector.broadcast %37 : vector<5x1xf32> to vector<5x9xf32>
    %39 = arith.mulf %34, %38 : vector<5x9xf32>
    %c0_11 = arith.constant 0 : index
    %c0_12 = arith.constant 0 : index
    %40 = vector.load %arg2[%c0_11, %c0_12] : memref<5x9xf32, #tpu.memory_space<vmem>>, vector<5x9xf32>
    tpu.vector_store %arg2[%c0_11, %c0_12], %39 {strides = array<i32>} : memref<5x9xf32, #tpu.memory_space<vmem>>, vector<5x9xf32>,
    return
  }
}

</mosaic_0001>

<llo_original>
// kernel: conv_bn_pallas.1
$region0: #{conv_bn_pallas.1}
  #allocation0 [shape = 'u32[]', space=smem, size = 0x4, offset = 0x4, fixed_abs, tag = 'smem constant byte address 0x4 - core index']
  #allocation1 [shape = 'u32[144,128]{1,0:T(1,128)}', space=vmem, size = 0x12000, scoped, tag = 'internal scratch']
  %s0 = inlined_call_operand.vmem [shape: f32[5,8], index: 0, kind: input, shape index: {}]
  %s1 = inlined_call_operand.vmem [shape: f32[1,2,4,4], index: 1, kind: input, shape index: {}]
  %s2 = inlined_call_operand.vmem [shape: f32[5,9], index: 2, kind: output, shape index: {}]
  %s3 = sld [smem:[#allocation0]]
  $region18: #{conv_bn_pallas.1} parent=0
    _
  %s5 = ssub.s32 1, %s3
  %s6 = scalar_select 0, %s5, %s3
  // Predicated region
  $region2: #{conv_bn_pallas.1} parent=0 // pred_check
    _
  $region3: #{conv_bn_pallas.1} parent=0 // pred_check_branch
    %8 = sbr.rel (0) target = $region5
  $region4: #{conv_bn_pallas.1} parent=0 // pred_region
    _
  $region5: #{conv_bn_pallas.1} parent=0 // pred_fallthru
    _
  // Predicated region
  $region6: #{conv_bn_pallas.1} parent=0 // pred_check
    _
  $region7: #{conv_bn_pallas.1} parent=0 // pred_check_branch
    %10 = sbr.rel (0) target = $region9
  $region8: #{conv_bn_pallas.1} parent=0 // pred_region
    _
  $region9: #{conv_bn_pallas.1} parent=0 // pred_fallthru
    _
  %v11 = vld [vmem:[%s1] sm:$0xf]
  %v12 = vld [vmem:[%s1 + $0x4] sm:$0xf]
  %v14 = vunpack.c.l.s4 1983009808
  %v15 = vunpack.c.0.s8 %v14
  %v16 = vlaneseq
  %v17 = vshrl.u32 %v16, 7
  %v18 = vsub.s32 %v15, %v17
  %v19 = vrot.slane %v11, %v18
  %v21 = vunpack.c.l.s4 1934713408
  %v22 = vunpack.c.0.s8 %v21
  %v23 = vlaneseq
  %v24 = vshrl.u32 %v23, 7
  %v25 = vsub.s32 %v22, %v24
  %v26 = vrot.slane %v19, %v25
  %v27 = vcombine.high %v26, 0.0
  %v28 = vcombine.high %v19, 0.0
  %30 = vrot.lane.b32.xlu0 %v27, 3
  %v31 = vpop.permute.xlu0 %30
  %34 = vrot.lane.b32.xlu0 %v28, 6
  %v35 = vpop.permute.xlu0 %34
  %vm37 = vcmask 23552
  %v38 = vsel %vm37, %v26, %v31
  %vm39 = vcmask 48128
  %v40 = vsel %vm39, %v38, %v35
  %42 = vrot.lane.b32.xlu0 %v11, 127
  %v43 = vpop.permute.xlu0 %42
  %v46 = vunpack.c.l.s4 1983009808
  %v47 = vunpack.c.0.s8 %v46
  %v48 = vlaneseq
  %v49 = vshrl.u32 %v48, 7
  %v50 = vsub.s32 %v47, %v49
  %v51 = vrot.slane %v43, %v50
  %v53 = vunpack.c.l.s4 1934713408
  %v54 = vunpack.c.0.s8 %v53
  %v55 = vlaneseq
  %v56 = vshrl.u32 %v55, 7
  %v57 = vsub.s32 %v54, %v56
  %v58 = vrot.slane %v51, %v57
  %v59 = vcombine.high %v58, 0.0
  %v60 = vcombine.high %v51, 0.0
  %62 = vrot.lane.b32.xlu0 %v59, 3
  %v63 = vpop.permute.xlu0 %62
  %66 = vrot.lane.b32.xlu0 %v60, 6
  %v67 = vpop.permute.xlu0 %66
  %v69 = vsel %vm37, %v58, %v63
  %v70 = vsel %vm39, %v69, %v67
  %v71 = vrot.slane %v11, 1
  %v74 = vunpack.c.l.s4 1983009808
  %v75 = vunpack.c.0.s8 %v74
  %v76 = vlaneseq
  %v77 = vshrl.u32 %v76, 7
  %v78 = vsub.s32 %v75, %v77
  %v79 = vrot.slane %v71, %v78
  %v81 = vunpack.c.l.s4 1934713408
  %v82 = vunpack.c.0.s8 %v81
  %v83 = vlaneseq
  %v84 = vshrl.u32 %v83, 7
  %v85 = vsub.s32 %v82, %v84
  %v86 = vrot.slane %v79, %v85
  %v87 = vcombine.high %v86, 0.0
  %v88 = vcombine.high %v79, 0.0
  %90 = vrot.lane.b32.xlu0 %v87, 3
  %v91 = vpop.permute.xlu0 %90
  %94 = vrot.lane.b32.xlu0 %v88, 6
  %v95 = vpop.permute.xlu0 %94
  %v97 = vsel %vm37, %v86, %v91
  %v98 = vsel %vm39, %v97, %v95
  %99 = vrot.lane.b32.xlu0 %v71, 127
  %v100 = vpop.permute.xlu0 %99
  %v103 = vunpack.c.l.s4 1983009808
  %v104 = vunpack.c.0.s8 %v103
  %v105 = vlaneseq
  %v106 = vshrl.u32 %v105, 7
  %v107 = vsub.s32 %v104, %v106
  %v108 = vrot.slane %v100, %v107
  %v110 = vunpack.c.l.s4 1934713408
  %v111 = vunpack.c.0.s8 %v110
  %v112 = vlaneseq
  %v113 = vshrl.u32 %v112, 7
  %v114 = vsub.s32 %v111, %v113
  %v115 = vrot.slane %v108, %v114
  %v116 = vcombine.high %v115, 0.0
  %v117 = vcombine.high %v108, 0.0
  %119 = vrot.lane.b32.xlu0 %v116, 3
  %v120 = vpop.permute.xlu0 %119
  %123 = vrot.lane.b32.xlu0 %v117, 6
  %v124 = vpop.permute.xlu0 %123
  %v126 = vsel %vm37, %v115, %v120
  %v127 = vsel %vm39, %v126, %v124
  %v129 = vunpack.c.l.s4 1983009808
  %v130 = vunpack.c.0.s8 %v129
  %v131 = vlaneseq
  %v132 = vshrl.u32 %v131, 7
  %v133 = vsub.s32 %v130, %v132
  %v134 = vrot.slane %v12, %v133
  %v136 = vunpack.c.l.s4 1934713408
  %v137 = vunpack.c.0.s8 %v136
  %v138 = vlaneseq
  %v139 = vshrl.u32 %v138, 7
  %v140 = vsub.s32 %v137, %v139
  %v141 = vrot.slane %v134, %v140
  %v142 = vcombine.high %v141, 0.0
  %v143 = vcombine.high %v134, 0.0
  %145 = vrot.lane.b32.xlu0 %v142, 3
  %v146 = vpop.permute.xlu0 %145
  %149 = vrot.lane.b32.xlu0 %v143, 6
  %v150 = vpop.permute.xlu0 %149
  %v152 = vsel %vm37, %v141, %v146
  %v153 = vsel %vm39, %v152, %v150
  %155 = vrot.lane.b32.xlu0 %v12, 127
  %v156 = vpop.permute.xlu0 %155
  %v159 = vunpack.c.l.s4 1983009808
  %v160 = vunpack.c.0.s8 %v159
  %v161 = vlaneseq
  %v162 = vshrl.u32 %v161, 7
  %v163 = vsub.s32 %v160, %v162
  %v164 = vrot.slane %v156, %v163
  %v166 = vunpack.c.l.s4 1934713408
  %v167 = vunpack.c.0.s8 %v166
  %v168 = vlaneseq
  %v169 = vshrl.u32 %v168, 7
  %v170 = vsub.s32 %v167, %v169
  %v171 = vrot.slane %v164, %v170
  %v172 = vcombine.high %v171, 0.0
  %v173 = vcombine.high %v164, 0.0
  %175 = vrot.lane.b32.xlu0 %v172, 3
  %v176 = vpop.permute.xlu0 %175
  %179 = vrot.lane.b32.xlu0 %v173, 6
  %v180 = vpop.permute.xlu0 %179
  %v182 = vsel %vm37, %v171, %v176
  %v183 = vsel %vm39, %v182, %v180
  %v184 = vrot.slane %v12, 1
  %v187 = vunpack.c.l.s4 1983009808
  %v188 = vunpack.c.0.s8 %v187
  %v189 = vlaneseq
  %v190 = vshrl.u32 %v189, 7
  %v191 = vsub.s32 %v188, %v190
  %v192 = vrot.slane %v184, %v191
  %v194 = vunpack.c.l.s4 1934713408
  %v195 = vunpack.c.0.s8 %v194
  %v196 = vlaneseq
  %v197 = vshrl.u32 %v196, 7
  %v198 = vsub.s32 %v195, %v197
  %v199 = vrot.slane %v192, %v198
  %v200 = vcombine.high %v199, 0.0
  %v201 = vcombine.high %v192, 0.0
  %203 = vrot.lane.b32.xlu0 %v200, 3
  %v204 = vpop.permute.xlu0 %203
  %207 = vrot.lane.b32.xlu0 %v201, 6
  %v208 = vpop.permute.xlu0 %207
  %v210 = vsel %vm37, %v199, %v204
  %v211 = vsel %vm39, %v210, %v208
  %212 = vrot.lane.b32.xlu0 %v184, 127
  %v213 = vpop.permute.xlu0 %212
  %v216 = vunpack.c.l.s4 1983009808
  %v217 = vunpack.c.0.s8 %v216
  %v218 = vlaneseq
  %v219 = vshrl.u32 %v218, 7
  %v220 = vsub.s32 %v217, %v219
  %v221 = vrot.slane %v213, %v220
  %v223 = vunpack.c.l.s4 1934713408
  %v224 = vunpack.c.0.s8 %v223
  %v225 = vlaneseq
  %v226 = vshrl.u32 %v225, 7
  %v227 = vsub.s32 %v224, %v226
  %v228 = vrot.slane %v221, %v227
  %v229 = vcombine.high %v228, 0.0
  %v230 = vcombine.high %v221, 0.0
  %232 = vrot.lane.b32.xlu0 %v229, 3
  %v233 = vpop.permute.xlu0 %232
  %236 = vrot.lane.b32.xlu0 %v230, 6
  %v237 = vpop.permute.xlu0 %236
  %v239 = vsel %vm37, %v228, %v233
  %v240 = vsel %vm39, %v239, %v237
  %v242 = vrot.slane %v70, 7
  %v245 = vrot.slane %v98, 6
  %v248 = vrot.slane %v127, 5
  %v251 = vrot.slane %v153, 4
  %v254 = vrot.slane %v183, 3
  %v257 = vrot.slane %v211, 2
  %v260 = vrot.slane %v240, 1
  %vm262 = vcmask 1040384
  %v263 = vsel %vm262, %v40, %v242
  %vm264 = vcmask 1041408
  %v265 = vsel %vm264, %v263, %v245
  %vm266 = vcmask 1042432
  %v267 = vsel %vm266, %v265, %v248
  %vm268 = vcmask 1043456
  %v269 = vsel %vm268, %v267, %v251
  %vm270 = vcmask 1044480
  %v271 = vsel %vm270, %v269, %v254
  %vm272 = vcmask 1045504
  %v273 = vsel %vm272, %v271, %v257
  %vm274 = vcmask 1046528
  %v275 = vsel %vm274, %v273, %v260
  %v276 = vld [vmem:[%s0] sm:$0x1f]
  %vm277 = vcmask 64512
  %v279 = vsel %vm277, %v276, 0
  %281 = vmatprep.subr.mxu0 0.0
  %282 = vmatpush1.msra.mxu0 %v275
  %283 = vmatprep.subr.mxu0 0.0
  %284 = vmatpush1.msra.mxu0 0.0
  %285 = vmatprep.subr.mxu0 0.0
  %286 = vmatpush1.msra.mxu0 0.0
  %287 = vmatprep.subr.mxu0 0.0
  %288 = vmatpush1.msra.mxu0 0.0
  %289 = vmatprep.subr.mxu0 0.0
  %290 = vmatpush1.msra.mxu0 0.0
  %291 = vmatprep.subr.mxu0 0.0
  %292 = vmatpush1.msra.mxu0 0.0
  %293 = vmatprep.subr.mxu0 0.0
  %294 = vmatpush1.msra.mxu0 0.0
  %295 = vmatprep.subr.mxu0 0.0
  %296 = vmatpush1.msra.mxu0 0.0
  %297 = vmatprep.subr.mxu0 0.0
  %298 = vmatpush1.msra.mxu0 0.0
  %299 = vmatprep.subr.mxu0 0.0
  %300 = vmatpush1.msra.mxu0 0.0
  %301 = vmatprep.subr.mxu0 0.0
  %302 = vmatpush1.msra.mxu0 0.0
  %303 = vmatprep.subr.mxu0 0.0
  %304 = vmatpush1.msra.mxu0 0.0
  %305 = vmatprep.subr.mxu0 0.0
  %306 = vmatpush1.msra.mxu0 0.0
  %307 = vmatprep.subr.mxu0 0.0
  %308 = vmatpush1.msra.mxu0 0.0
  %309 = vmatprep.subr.mxu0 0.0
  %310 = vmatpush1.msra.mxu0 0.0
  %311 = vmatprep.subr.mxu0 0.0
  %312 = vmatpush1.msra.mxu0 0.0
  %313 = vmatprep.subr.mxu0 0.0
  %314 = vmatpush1.msra.mxu0 0.0
  %315 = vmatprep.subr.mxu0 0.0
  %316 = vmatpush1.msra.mxu0 0.0
  %317 = vmatprep.subr.mxu0 0.0
  %318 = vmatpush1.msra.mxu0 0.0
  %319 = vmatprep.subr.mxu0 0.0
  %320 = vmatpush1.msra.mxu0 0.0
  %321 = vmatprep.subr.mxu0 0.0
  %322 = vmatpush1.msra.mxu0 0.0
  %323 = vmatprep.subr.mxu0 0.0
  %324 = vmatpush1.msra.mxu0 0.0
  %325 = vmatprep.subr.mxu0 0.0
  %326 = vmatpush1.msra.mxu0 0.0
  %327 = vmatprep.subr.mxu0 0.0
  %328 = vmatpush1.msra.mxu0 0.0
  %329 = vmatprep.subr.mxu0 0.0
  %330 = vmatpush1.msra.mxu0 0.0
  %331 = vmatprep.subr.mxu0 0.0
  %332 = vmatpush1.msra.mxu0 0.0
  %333 = vmatprep.subr.mxu0 0.0
  %334 = vmatpush1.msra.mxu0 0.0
  %335 = vmatprep.subr.mxu0 0.0
  %336 = vmatpush1.msra.mxu0 0.0
  %337 = vmatprep.subr.mxu0 0.0
  %338 = vmatpush1.msra.mxu0 0.0
  %339 = vmatprep.subr.mxu0 0.0
  %340 = vmatpush1.msra.mxu0 0.0
  %341 = vmatprep.subr.mxu0 0.0
  %342 = vmatpush1.msra.mxu0 0.0
  %343 = vmatprep.subr.mxu0 0.0
  %344 = vmatpush1.msra.mxu0 0.0
  %345 = vmatprep.mubr.f32.mxu0 0.0
  %346 = vmatmul.mubr.f32.gmra.mrb[0].mxu0 %v279
  %v347 = vpop.f32.mrb[0].mxu0
  %v348 = vadd.f32 0.0, %v347
  %v349 = vpop.f32.mrb[0].mxu0
  %350 = vdwg.mxu0
  %vm351 = vcmask 69632
  %v352 = vsel %vm351, %v348, 0.0
  %353 = vadd.xlane.f32.xlu0 %v352
  %v354 = vpop.xlane.xlu0 %353
  %v355 = vmul.f32 %v348, %v348
  %v356 = vsel %vm351, %v355, 0.0
  %357 = vadd.xlane.f32.xlu0 %v356
  %v358 = vpop.xlane.xlu0 %357
  %v359 = vmul.f32 %v354, 0.11111111
  %v360 = vmul.f32 %v358, 0.11111111
  %v361 = vmul.f32 %v359, %v359
  %v362 = vsub.f32 %v360, %v361
  %v363 = vmax.f32 %v362, 0.0
  %v364 = vsub.f32 %v348, %v359
  %v365 = vadd.f32 %v363, 1e-05
  %v366 = vrsqrt.pop %v365
  %v367 = vmul.f32 %v364, %v366
  %368 = vst.msk [vmem:[%s2] sm:$0x1f] %vm351, %v367
  // Predicated region
  $region10: #{conv_bn_pallas.1} parent=0 // pred_check
    _
  $region11: #{conv_bn_pallas.1} parent=0 // pred_check_branch
    %370 = sbr.rel (0) target = $region13
  $region12: #{conv_bn_pallas.1} parent=0 // pred_region
    _
  $region13: #{conv_bn_pallas.1} parent=0 // pred_fallthru
    _
  // Predicated region
  $region14: #{conv_bn_pallas.1} parent=0 // pred_check
    _
  $region15: #{conv_bn_pallas.1} parent=0 // pred_check_branch
    %372 = sbr.rel (0) target = $region17
  $region16: #{conv_bn_pallas.1} parent=0 // pred_region
    _
  $region17: #{conv_bn_pallas.1} parent=0 // pred_fallthru
    _

</llo_original>
